<compile_context>
chip_gen: v7x
topology: tpu7x:2x2x1
jax: 0.10.0
libtpu: 0.0.40
codegen_flags: <defaults>
</compile_context>

<pallas_src>
import functools

import jax
import jax.numpy as jnp
from jax.experimental import pallas as pl
from jax.experimental.pallas import tpu as pltpu


def _round_up(x, m):
    return ((x + m - 1) // m) * m


def _policy_kernel(n_hidden_layers, action_scale, action_bias, operand_dtype, *refs):
    # refs layout: x_ref, (w_ref, b_ref) * n_hidden_layers, wm_ref, bm_ref, out_ref
    x_ref = refs[0]
    out_ref = refs[-1]
    param_refs = refs[1:-1]

    h = x_ref[...].astype(jnp.float32)

    # Hidden layers: Linear + ReLU.  MXU matmuls accumulate in f32; operands can
    # optionally be cast to bf16 (v6e/v7x, wide hidden dims) via operand_dtype.
    for l in range(n_hidden_layers):
        w = param_refs[2 * l][...]
        b = param_refs[2 * l + 1][...].astype(jnp.float32)
        h = jnp.dot(h.astype(operand_dtype), w.astype(operand_dtype),
                    preferred_element_type=jnp.float32) + b
        h = jnp.maximum(h, 0.0)

    # Mean head: Linear -> tanh -> (optional) affine rescale.
    wm = param_refs[2 * n_hidden_layers][...]
    bm = param_refs[2 * n_hidden_layers + 1][...].astype(jnp.float32)
    m = jnp.tanh(jnp.dot(h.astype(operand_dtype), wm.astype(operand_dtype),
                         preferred_element_type=jnp.float32) + bm)

    # Trace-time skip of the affine for the action_space=None defaults.
    # (action_scale / action_bias must be Python scalars, not traced values.)
    if action_scale != 1.0 or action_bias != 0.0:
        m = m * action_scale + action_bias

    out_ref[...] = m.astype(out_ref.dtype)


def _choose_batch_tile(B):
    """Rows per grid step.  Single tile for small batches; otherwise ~2048-row
    tiles with an even step count so both v7x TensorCores get equal work."""
    if B <= 1024:
        return _round_up(max(B, 1), 8)
    n_steps = pl.cdiv(B, 2048)
    if n_steps % 2:
        n_steps += 1
    return _round_up(pl.cdiv(B, n_steps), 8)


def deterministic_policy_forward(state, params, *, action_scale=1.0,
                                 action_bias=0.0, operand_dtype=jnp.float32):
    """state: [B, num_inputs] float32.
    params: list of (W, b) with W: [in, out] (transpose of PyTorch's [out, in]),
            b: [1, out]; the last pair is the mean head.
    Returns: [B, num_actions] float32.
    """
    n_hidden_layers = len(params) - 1
    B, num_inputs = state.shape
    num_actions = params[-1][0].shape[1]

    TB = _choose_batch_tile(B)
    grid = (pl.cdiv(B, TB),)

    flat_args = [state]
    for w, b in params:
        flat_args.append(w)
        flat_args.append(b)

    # x is tiled over the batch grid axis; every weight/bias is a full-array
    # block with a constant index map so it stays VMEM-resident across steps.
    in_specs = [pl.BlockSpec((TB, num_inputs), lambda i: (i, 0))]
    for w, b in params:
        in_specs.append(pl.BlockSpec(w.shape, lambda i: (0, 0)))
        in_specs.append(pl.BlockSpec(b.shape, lambda i: (0, 0)))
    # Narrow but unpadded output block: last dim == full array dim (legal), and a
    # masked store of (TB, 4) beats 32x write amplification of a 128-wide pad.
    out_spec = pl.BlockSpec((TB, num_actions), lambda i: (i, 0))

    # VMEM budget estimate: double-buffered x/out tiles + double-buffered
    # (resident) params + f32 activation scratch.  Only raise the scoped limit
    # when the small defaults (16 MiB on v5e) would not fit; capped at 64 MiB so
    # it stays within v7x's per-TC physical VMEM.
    param_bytes = sum(w.size * w.dtype.itemsize + b.size * b.dtype.itemsize
                      for w, b in params)
    widths = [num_inputs, num_actions] + [w.shape[1] for w, _ in params]
    est = (2 * TB * (num_inputs + num_actions) * 4
           + 2 * param_bytes
           + 2 * TB * max(widths) * 4)
    vmem_limit = None
    if est > 12 * 1024 * 1024:
        vmem_limit = int(min(_round_up(2 * est, 1 << 20), 64 * 1024 * 1024))

    kernel = functools.partial(
        _policy_kernel, n_hidden_layers, float(action_scale), float(action_bias),
        operand_dtype)

    return pl.pallas_call(
        kernel,
        grid=grid,
        in_specs=in_specs,
        out_specs=out_spec,
        out_shape=jax.ShapeDtypeStruct((B, num_actions), jnp.float32),
        compiler_params=pltpu.CompilerParams(
            # Batch tiles are independent -> shard across TensorCores on v7x.
            dimension_semantics=("parallel",),
            vmem_limit_bytes=vmem_limit,
        ),
    )(*flat_args)


def init_params(key, num_inputs, num_actions, hidden_dims):
    """Xavier-uniform weights (gain=1), zero biases — mirrors weights_init_."""
    params = []
    dims = [num_inputs] + list(hidden_dims) + [num_actions]
    for i in range(len(dims) - 1):
        fan_in, fan_out = dims[i], dims[i + 1]
        key, sub = jax.random.split(key)
        bound = (6.0 / (fan_in + fan_out)) ** 0.5
        w = jax.random.uniform(
            sub, (fan_in, fan_out), dtype=jnp.float32, minval=-bound, maxval=bound)
        b = jnp.zeros((1, fan_out), dtype=jnp.float32)
        params.append((w, b))
    return params


def _reference(state, params, action_scale=1.0, action_bias=0.0):
    h = state
    for w, b in params[:-1]:
        h = jnp.maximum(h @ w + b, 0.0)
    return jnp.tanh(h @ params[-1][0] + params[-1][1]) * action_scale + action_bias


if __name__ == "__main__":
    # Small shapes consistent with the module's forward:
    #   state: [batch=2, num_inputs=16], hidden_dims=(32, 32), num_actions=4
    num_inputs, num_actions, hidden_dims = 16, 4, (32, 32)

    key = jax.random.PRNGKey(0)
    key, k_state = jax.random.split(key)
    params = init_params(key, num_inputs, num_actions, hidden_dims)

    # --- 1) the module's tiny batch (single partial tile, masked rows) ---
    batch = 2
    state = jax.random.normal(k_state, (batch, num_inputs), dtype=jnp.float32)
    mean = jax.block_until_ready(deterministic_policy_forward(state, params))
    ref = _reference(state, params)
    assert mean.shape == (batch, num_actions)
    assert jnp.allclose(mean, ref, atol=2e-5, rtol=2e-5), "tiny-batch mismatch"

    # --- 2) non-multiple-of-8 batch (single partial tile) ---
    key, k_mid = jax.random.split(key)
    mid_state = jax.random.normal(k_mid, (50, num_inputs), dtype=jnp.float32)
    mid_mean = jax.block_until_ready(deterministic_policy_forward(mid_state, params))
    assert mid_mean.shape == (50, num_actions)
    assert jnp.allclose(mid_mean, _reference(mid_state, params), atol=2e-5, rtol=2e-5)

    # --- 3) multi-tile batch (partial last tile) + non-trivial affine head ---
    key, k_big = jax.random.split(key)
    big_batch = 2600  # -> TB=1304, grid of 2 parallel steps, last tile partial
    big_state = jax.random.normal(k_big, (big_batch, num_inputs), dtype=jnp.float32)
    big_mean = jax.block_until_ready(
        deterministic_policy_forward(big_state, params,
                                     action_scale=2.0, action_bias=0.5))
    big_ref = _reference(big_state, params, action_scale=2.0, action_bias=0.5)
    assert big_mean.shape == (big_batch, num_actions)
    assert jnp.allclose(big_mean, big_ref, atol=5e-5, rtol=5e-5)

    # TODO(synk): sample()'s in-place torch noise buffer (normal_ + clamp) is
    # host-side RNG state, not part of forward(); intentionally not in-kernel.
    print("KERNEL_OK")
</pallas_src>

<mosaic_0001>
module attributes {stable_mosaic.version = 11 : i64} {
  func.func @_policy_kernel(%arg0: i32, %arg1: memref<8x16xf32, #tpu.memory_space<vmem>>, %arg2: memref<16x32xf32, #tpu.memory_space<vmem>>, %arg3: memref<1x32xf32, #tpu.memory_space<vmem>>, %arg4: memref<32x32xf32, #tpu.memory_space<vmem>>, %arg5: memref<1x32xf32, #tpu.memory_space<vmem>>, %arg6: memref<32x4xf32, #tpu.memory_space<vmem>>, %arg7: memref<1x4xf32, #tpu.memory_space<vmem>>, %arg8: memref<8x4xf32, #tpu.memory_space<vmem>>) attributes {dimension_semantics = [#tpu.dimension_semantics<parallel>], iteration_bounds = array<i64: 1>, scalar_prefetch = 0 : i64, scratch_operands = 0 : i64, tpu.core_type = #tpu.core_type<tc>, window_params = [{transform_indices = @transform_0, window_bounds = array<i64: 8, 16>}, {pipeline_mode = #tpu.pipeline_mode<synchronous>, transform_indices = @transform_1, window_bounds = array<i64: 16, 32>}, {pipeline_mode = #tpu.pipeline_mode<synchronous>, transform_indices = @transform_2, window_bounds = array<i64: 1, 32>}, {pipeline_mode = #tpu.pipeline_mode<synchronous>, transform_indices = @transform_3, window_bounds = array<i64: 32, 32>}, {pipeline_mode = #tpu.pipeline_mode<synchronous>, transform_indices = @transform_4, window_bounds = array<i64: 1, 32>}, {pipeline_mode = #tpu.pipeline_mode<synchronous>, transform_indices = @transform_5, window_bounds = array<i64: 32, 4>}, {pipeline_mode = #tpu.pipeline_mode<synchronous>, transform_indices = @transform_6, window_bounds = array<i64: 1, 4>}, {transform_indices = @transform_7, window_bounds = array<i64: 8, 4>}]} {
    %c0 = arith.constant 0 : index
    %c0_0 = arith.constant 0 : index
    %0 = vector.load %arg1[%c0, %c0_0] : memref<8x16xf32, #tpu.memory_space<vmem>>, vector<8x16xf32>
    %c0_1 = arith.constant 0 : index
    %c0_2 = arith.constant 0 : index
    %1 = vector.load %arg2[%c0_1, %c0_2] : memref<16x32xf32, #tpu.memory_space<vmem>>, vector<16x32xf32>
    %c0_3 = arith.constant 0 : index
    %c0_4 = arith.constant 0 : index
    %2 = vector.load %arg3[%c0_3, %c0_4] : memref<1x32xf32, #tpu.memory_space<vmem>>, vector<1x32xf32>
    %cst = arith.constant dense<0.000000e+00> : vector<8x32xf32>
    %3 = tpu.matmul %0, %1, %cst {dimension_numbers = #tpu.dot_dimension_numbers<[1], [0], [0], [1], [0, 0, 1, 1], [], []>} : vector<8x16xf32>, vector<16x32xf32>, vector<8x32xf32> -> vector<8x32xf32>
    %4 = vector.broadcast %2 : vector<1x32xf32> to vector<8x32xf32>
    %5 = arith.addf %3, %4 : vector<8x32xf32>
    %cst_5 = arith.constant 0.000000e+00 : f32
    %6 = vector.broadcast %cst_5 : f32 to vector<8x32xf32>
    %7 = arith.maximumf %5, %6 : vector<8x32xf32>
    %c0_6 = arith.constant 0 : index
    %c0_7 = arith.constant 0 : index
    %8 = vector.load %arg4[%c0_6, %c0_7] : memref<32x32xf32, #tpu.memory_space<vmem>>, vector<32x32xf32>
    %c0_8 = arith.constant 0 : index
    %c0_9 = arith.constant 0 : index
    %9 = vector.load %arg5[%c0_8, %c0_9] : memref<1x32xf32, #tpu.memory_space<vmem>>, vector<1x32xf32>
    %cst_10 = arith.constant dense<0.000000e+00> : vector<8x32xf32>
    %10 = tpu.matmul %7, %8, %cst_10 {dimension_numbers = #tpu.dot_dimension_numbers<[1], [0], [0], [1], [0, 0, 1, 1], [], []>} : vector<8x32xf32>, vector<32x32xf32>, vector<8x32xf32> -> vector<8x32xf32>
    %11 = vector.broadcast %9 : vector<1x32xf32> to vector<8x32xf32>
    %12 = arith.addf %10, %11 : vector<8x32xf32>
    %cst_11 = arith.constant 0.000000e+00 : f32
    %13 = vector.broadcast %cst_11 : f32 to vector<8x32xf32>
    %14 = arith.maximumf %12, %13 : vector<8x32xf32>
    %c0_12 = arith.constant 0 : index
    %c0_13 = arith.constant 0 : index
    %15 = vector.load %arg6[%c0_12, %c0_13] : memref<32x4xf32, #tpu.memory_space<vmem>>, vector<32x4xf32>
    %c0_14 = arith.constant 0 : index
    %c0_15 = arith.constant 0 : index
    %16 = vector.load %arg7[%c0_14, %c0_15] : memref<1x4xf32, #tpu.memory_space<vmem>>, vector<1x4xf32>
    %cst_16 = arith.constant dense<0.000000e+00> : vector<8x4xf32>
    %17 = tpu.matmul %14, %15, %cst_16 {dimension_numbers = #tpu.dot_dimension_numbers<[1], [0], [0], [1], [0, 0, 1, 1], [], []>} : vector<8x32xf32>, vector<32x4xf32>, vector<8x4xf32> -> vector<8x4xf32>
    %18 = vector.broadcast %16 : vector<1x4xf32> to vector<8x4xf32>
    %19 = arith.addf %17, %18 : vector<8x4xf32>
    %20 = math.tanh %19 : vector<8x4xf32>
    %c0_17 = arith.constant 0 : index
    %c0_18 = arith.constant 0 : index
    %21 = vector.load %arg8[%c0_17, %c0_18] : memref<8x4xf32, #tpu.memory_space<vmem>>, vector<8x4xf32>
    tpu.vector_store %arg8[%c0_17, %c0_18], %20 {strides = array<i32>} : memref<8x4xf32, #tpu.memory_space<vmem>>, vector<8x4xf32>,
    return
  }
  func.func @transform_0(%arg0: i32) -> (i32, i32) {
    %c0_i32 = arith.constant 0 : i32
    %c0_i32_0 = arith.constant 0 : i32
    return %arg0, %c0_i32 : i32, i32
  }
  func.func @transform_1(%arg0: i32) -> (i32, i32) {
    %c0_i32 = arith.constant 0 : i32
    %c0_i32_0 = arith.constant 0 : i32
    %c0_i32_1 = arith.constant 0 : i32
    return %c0_i32, %c0_i32_0 : i32, i32
  }
  func.func @transform_2(%arg0: i32) -> (i32, i32) {
    %c0_i32 = arith.constant 0 : i32
    %c0_i32_0 = arith.constant 0 : i32
    %c0_i32_1 = arith.constant 0 : i32
    return %c0_i32, %c0_i32_0 : i32, i32
  }
  func.func @transform_3(%arg0: i32) -> (i32, i32) {
    %c0_i32 = arith.constant 0 : i32
    %c0_i32_0 = arith.constant 0 : i32
    %c0_i32_1 = arith.constant 0 : i32
    return %c0_i32, %c0_i32_0 : i32, i32
  }
  func.func @transform_4(%arg0: i32) -> (i32, i32) {
    %c0_i32 = arith.constant 0 : i32
    %c0_i32_0 = arith.constant 0 : i32
    %c0_i32_1 = arith.constant 0 : i32
    return %c0_i32, %c0_i32_0 : i32, i32
  }
  func.func @transform_5(%arg0: i32) -> (i32, i32) {
    %c0_i32 = arith.constant 0 : i32
    %c0_i32_0 = arith.constant 0 : i32
    %c0_i32_1 = arith.constant 0 : i32
    return %c0_i32, %c0_i32_0 : i32, i32
  }
  func.func @transform_6(%arg0: i32) -> (i32, i32) {
    %c0_i32 = arith.constant 0 : i32
    %c0_i32_0 = arith.constant 0 : i32
    %c0_i32_1 = arith.constant 0 : i32
    return %c0_i32, %c0_i32_0 : i32, i32
  }
  func.func @transform_7(%arg0: i32) -> (i32, i32) {
    %c0_i32 = arith.constant 0 : i32
    %c0_i32_0 = arith.constant 0 : i32
    return %arg0, %c0_i32 : i32, i32
  }
}

</mosaic_0001>

<llo_original>
// kernel: tpu_custom_call.1
$region0: #{tpu_custom_call.1}
  #allocation0 [shape = 'u32[]', space=smem, size = 0x4, offset = 0x4, fixed_abs, tag = 'smem constant byte address 0x4 - core index']
  #allocation1 [shape = 'u32[144,128]{1,0:T(1,128)}', space=vmem, size = 0x12000, scoped, tag = 'internal scratch']
  %s0 = inlined_call_operand.vmem [shape: f32[2,16], index: 0, kind: input, shape index: {}]
  %s1 = inlined_call_operand.hbm [shape: f32[16,32], index: 1, kind: input, shape index: {}]
  %s2 = inlined_call_operand.vmem [shape: f32[1,32], index: 2, kind: input, shape index: {}]
  %s3 = inlined_call_operand.vmem [shape: f32[32,32], index: 3, kind: input, shape index: {}]
  %s4 = inlined_call_operand.vmem [shape: f32[1,32], index: 4, kind: input, shape index: {}]
  %s5 = inlined_call_operand.vmem [shape: f32[32,4], index: 5, kind: input, shape index: {}]
  %s6 = inlined_call_operand.vmem [shape: f32[1,4], index: 6, kind: input, shape index: {}]
  %s7 = inlined_call_operand.hbm [shape: f32[2,4], index: 7, kind: output, shape index: {}]
  %s8 = sld [smem:[#allocation0]]
  $region42: #{tpu_custom_call.1} parent=0
    _
  %s10 = ssub.s32 1, %s8
  %s11 = scalar_select 0, %s10, %s8
  $region1: #{tpu_custom_call.1} parent=0
    #allocation2 [shape = 'u8[8192]{0}', space=vmem, size = 0x2000, scoped, tag = 'input window, operand 1, single buffered']
    #allocation3 [shape = 's32[1]{0}', space=sflag, size = 0x4, scoped, tag = 'scoped memory for tpu_custom_call.1']
    #allocation4 [shape = 's32[1]{0}', space=sflag, size = 0x4, scoped, tag = 'scoped memory for tpu_custom_call.1']
    #allocation5 [shape = 'u8[4096]{0}', space=vmem, size = 0x1000, scoped, tag = 'output window, operand 0, single buffered']
    %12 = vsyncpa [#allocation3], 0
    %13 = vsyncpa [#allocation4], 0
    // Predicated region
    $region2: #{tpu_custom_call.1} parent=1 // pred_check
      _
    $region3: #{tpu_custom_call.1} parent=1 // pred_check_branch
      %15 = sbr.rel (0) target = $region5
    $region4: #{tpu_custom_call.1} parent=1 // pred_region
      _
    $region5: #{tpu_custom_call.1} parent=1 // pred_fallthru
      _
    // Predicated region
    $region6: #{tpu_custom_call.1} parent=1 // pred_check
      _
    $region7: #{tpu_custom_call.1} parent=1 // pred_check_branch
      %17 = sbr.rel (0) target = $region9
    $region8: #{tpu_custom_call.1} parent=1 // pred_region
      %s19 = ssub.s32 256, 256
      %20 = vsyncadd [#allocation3], %s19
      %s21 = sshll.u32 [#allocation2], 4
      %s22 = int_to_ptr.vmem [resolvable:$true] %s21
      %27 = dma.hbm_to_vmem [thread:$0]  %s1, 256, %s22, [#allocation3], 128, 128, 8
    $region9: #{tpu_custom_call.1} parent=1 // pred_fallthru
      _
    // Predicated region
    $region10: #{tpu_custom_call.1} parent=1 // pred_check
      _
    $region11: #{tpu_custom_call.1} parent=1 // pred_check_branch
      %29 = sbr.rel (0) target = $region13
    $region12: #{tpu_custom_call.1} parent=1 // pred_region
      _
    $region13: #{tpu_custom_call.1} parent=1 // pred_fallthru
      _
    // Predicated region
    $region14: #{tpu_custom_call.1} parent=1 // pred_check
      _
    $region15: #{tpu_custom_call.1} parent=1 // pred_check_branch
      %31 = sbr.rel (0) target = $region17
    $region16: #{tpu_custom_call.1} parent=1 // pred_region
      _
    $region17: #{tpu_custom_call.1} parent=1 // pred_fallthru
      _
    // Predicated region
    $region18: #{tpu_custom_call.1} parent=1 // pred_check
      _
    $region19: #{tpu_custom_call.1} parent=1 // pred_check_branch
      %33 = sbr.rel (0) target = $region21
    $region20: #{tpu_custom_call.1} parent=1 // pred_region
      _
    $region21: #{tpu_custom_call.1} parent=1 // pred_fallthru
      _
    // Predicated region
    $region22: #{tpu_custom_call.1} parent=1 // pred_check
      _
    $region23: #{tpu_custom_call.1} parent=1 // pred_check_branch
      %35 = sbr.rel (0) target = $region25
    $region24: #{tpu_custom_call.1} parent=1 // pred_region
      _
    $region25: #{tpu_custom_call.1} parent=1 // pred_fallthru
      _
    // Predicated region
    $region26: #{tpu_custom_call.1} parent=1 // pred_check
      _
    $region27: #{tpu_custom_call.1} parent=1 // pred_check_branch
      %37 = sbr.rel (0) target = $region29
    $region28: #{tpu_custom_call.1} parent=1 // pred_region
      _
    $region29: #{tpu_custom_call.1} parent=1 // pred_fallthru
      _
    // Predicated region
    $region30: #{tpu_custom_call.1} parent=1 // pred_check
      _
    $region31: #{tpu_custom_call.1} parent=1 // pred_check_branch
      %39 = sbr.rel (0) target = $region33
    $region32: #{tpu_custom_call.1} parent=1 // pred_region
      %40 = dma.done [#allocation3], 256
    $region33: #{tpu_custom_call.1} parent=1 // pred_fallthru
      _
    %v41 = vld [vmem:[%s0] sm:$0xff]
    %v42 = vld [vmem:[#allocation2] sm:$0xff]
    %v43 = vld [vmem:[#allocation2 + $0x8] sm:$0xff]
    %v44 = vld [vmem:[%s2] sm:$0x1]
    %v46 = vlaneseq
    %v47 = vshrl.u32 %v46, 7
    %v48 = vsub.s32 0, %v47
    %v49 = vrot.slane %v44, %v48
    %vm51 = vcmask 130048
    %v53 = vsel %vm51, %v41, 0
    %55 = vmatprep.subr.mxu0 0.0
    %56 = vmatpush1.msra.mxu0 %v42
    %57 = vmatprep.subr.mxu0 0.0
    %58 = vmatpush1.msra.mxu0 %v43
    %59 = vmatprep.subr.mxu0 0.0
    %60 = vmatpush1.msra.mxu0 0.0
    %61 = vmatprep.subr.mxu0 0.0
    %62 = vmatpush1.msra.mxu0 0.0
    %63 = vmatprep.subr.mxu0 0.0
    %64 = vmatpush1.msra.mxu0 0.0
    %65 = vmatprep.subr.mxu0 0.0
    %66 = vmatpush1.msra.mxu0 0.0
    %67 = vmatprep.subr.mxu0 0.0
    %68 = vmatpush1.msra.mxu0 0.0
    %69 = vmatprep.subr.mxu0 0.0
    %70 = vmatpush1.msra.mxu0 0.0
    %71 = vmatprep.subr.mxu0 0.0
    %72 = vmatpush1.msra.mxu0 0.0
    %73 = vmatprep.subr.mxu0 0.0
    %74 = vmatpush1.msra.mxu0 0.0
    %75 = vmatprep.subr.mxu0 0.0
    %76 = vmatpush1.msra.mxu0 0.0
    %77 = vmatprep.subr.mxu0 0.0
    %78 = vmatpush1.msra.mxu0 0.0
    %79 = vmatprep.subr.mxu0 0.0
    %80 = vmatpush1.msra.mxu0 0.0
    %81 = vmatprep.subr.mxu0 0.0
    %82 = vmatpush1.msra.mxu0 0.0
    %83 = vmatprep.subr.mxu0 0.0
    %84 = vmatpush1.msra.mxu0 0.0
    %85 = vmatprep.subr.mxu0 0.0
    %86 = vmatpush1.msra.mxu0 0.0
    %87 = vmatprep.subr.mxu0 0.0
    %88 = vmatpush1.msra.mxu0 0.0
    %89 = vmatprep.subr.mxu0 0.0
    %90 = vmatpush1.msra.mxu0 0.0
    %91 = vmatprep.subr.mxu0 0.0
    %92 = vmatpush1.msra.mxu0 0.0
    %93 = vmatprep.subr.mxu0 0.0
    %94 = vmatpush1.msra.mxu0 0.0
    %95 = vmatprep.subr.mxu0 0.0
    %96 = vmatpush1.msra.mxu0 0.0
    %97 = vmatprep.subr.mxu0 0.0
    %98 = vmatpush1.msra.mxu0 0.0
    %99 = vmatprep.subr.mxu0 0.0
    %100 = vmatpush1.msra.mxu0 0.0
    %101 = vmatprep.subr.mxu0 0.0
    %102 = vmatpush1.msra.mxu0 0.0
    %103 = vmatprep.subr.mxu0 0.0
    %104 = vmatpush1.msra.mxu0 0.0
    %105 = vmatprep.subr.mxu0 0.0
    %106 = vmatpush1.msra.mxu0 0.0
    %107 = vmatprep.subr.mxu0 0.0
    %108 = vmatpush1.msra.mxu0 0.0
    %109 = vmatprep.subr.mxu0 0.0
    %110 = vmatpush1.msra.mxu0 0.0
    %111 = vmatprep.subr.mxu0 0.0
    %112 = vmatpush1.msra.mxu0 0.0
    %113 = vmatprep.subr.mxu0 0.0
    %114 = vmatpush1.msra.mxu0 0.0
    %115 = vmatprep.subr.mxu0 0.0
    %116 = vmatpush1.msra.mxu0 0.0
    %117 = vmatprep.subr.mxu0 0.0
    %118 = vmatpush1.msra.mxu0 0.0
    %119 = vmatprep.mubr.f32.mxu0 0.0
    %120 = vmatmul.mubr.f32.gmra.mrb[0].mxu0 %v53
    %v121 = vpop.f32.mrb[0].mxu0
    %v122 = vadd.f32 %v49, %v121
    %v123 = vpop.f32.mrb[0].mxu0
    %124 = vdwg.mxu0
    %v125 = vmax.f32 %v122, 0.0
    %v126 = vld [vmem:[%s3] sm:$0xff]
    %v127 = vld [vmem:[%s3 + $0x8] sm:$0xff]
    %v128 = vld [vmem:[%s3 + $0x10] sm:$0xff]
    %v129 = vld [vmem:[%s3 + $0x18] sm:$0xff]
    %v130 = vld [vmem:[%s4] sm:$0x1]
    %v132 = vlaneseq
    %v133 = vshrl.u32 %v132, 7
    %v134 = vsub.s32 0, %v133
    %v135 = vrot.slane %v130, %v134
    %vm137 = vcmask 261120
    %v139 = vsel %vm137, %v125, 0
    %141 = vmatprep.subr.mxu0 0.0
    %142 = vmatpush1.msra.mxu0 %v126
    %143 = vmatprep.subr.mxu0 0.0
    %144 = vmatpush1.msra.mxu0 %v127
    %145 = vmatprep.subr.mxu0 0.0
    %146 = vmatpush1.msra.mxu0 %v128
    %147 = vmatprep.subr.mxu0 0.0
    %148 = vmatpush1.msra.mxu0 %v129
    %149 = vmatprep.subr.mxu0 0.0
    %150 = vmatpush1.msra.mxu0 0.0
    %151 = vmatprep.subr.mxu0 0.0
    %152 = vmatpush1.msra.mxu0 0.0
    %153 = vmatprep.subr.mxu0 0.0
    %154 = vmatpush1.msra.mxu0 0.0
    %155 = vmatprep.subr.mxu0 0.0
    %156 = vmatpush1.msra.mxu0 0.0
    %157 = vmatprep.subr.mxu0 0.0
    %158 = vmatpush1.msra.mxu0 0.0
    %159 = vmatprep.subr.mxu0 0.0
    %160 = vmatpush1.msra.mxu0 0.0
    %161 = vmatprep.subr.mxu0 0.0
    %162 = vmatpush1.msra.mxu0 0.0
    %163 = vmatprep.subr.mxu0 0.0
    %164 = vmatpush1.msra.mxu0 0.0
    %165 = vmatprep.subr.mxu0 0.0
    %166 = vmatpush1.msra.mxu0 0.0
    %167 = vmatprep.subr.mxu0 0.0
    %168 = vmatpush1.msra.mxu0 0.0
    %169 = vmatprep.subr.mxu0 0.0
    %170 = vmatpush1.msra.mxu0 0.0
    %171 = vmatprep.subr.mxu0 0.0
    %172 = vmatpush1.msra.mxu0 0.0
    %173 = vmatprep.subr.mxu0 0.0
    %174 = vmatpush1.msra.mxu0 0.0
    %175 = vmatprep.subr.mxu0 0.0
    %176 = vmatpush1.msra.mxu0 0.0
    %177 = vmatprep.subr.mxu0 0.0
    %178 = vmatpush1.msra.mxu0 0.0
    %179 = vmatprep.subr.mxu0 0.0
    %180 = vmatpush1.msra.mxu0 0.0
    %181 = vmatprep.subr.mxu0 0.0
    %182 = vmatpush1.msra.mxu0 0.0
    %183 = vmatprep.subr.mxu0 0.0
    %184 = vmatpush1.msra.mxu0 0.0
    %185 = vmatprep.subr.mxu0 0.0
    %186 = vmatpush1.msra.mxu0 0.0
    %187 = vmatprep.subr.mxu0 0.0
    %188 = vmatpush1.msra.mxu0 0.0
    %189 = vmatprep.subr.mxu0 0.0
    %190 = vmatpush1.msra.mxu0 0.0
    %191 = vmatprep.subr.mxu0 0.0
    %192 = vmatpush1.msra.mxu0 0.0
    %193 = vmatprep.subr.mxu0 0.0
    %194 = vmatpush1.msra.mxu0 0.0
    %195 = vmatprep.subr.mxu0 0.0
    %196 = vmatpush1.msra.mxu0 0.0
    %197 = vmatprep.subr.mxu0 0.0
    %198 = vmatpush1.msra.mxu0 0.0
    %199 = vmatprep.subr.mxu0 0.0
    %200 = vmatpush1.msra.mxu0 0.0
    %201 = vmatprep.subr.mxu0 0.0
    %202 = vmatpush1.msra.mxu0 0.0
    %203 = vmatprep.subr.mxu0 0.0
    %204 = vmatpush1.msra.mxu0 0.0
    %205 = vmatprep.mubr.f32.mxu0 0.0
    %206 = vmatmul.mubr.f32.gmra.mrb[0].mxu0 %v139
    %v207 = vpop.f32.mrb[0].mxu0
    %v208 = vadd.f32 %v135, %v207
    %v209 = vpop.f32.mrb[0].mxu0
    %210 = vdwg.mxu0
    %v211 = vmax.f32 %v208, 0.0
    %v212 = vld [vmem:[%s5] sm:$0xff]
    %v213 = vld [vmem:[%s5 + $0x8] sm:$0xff]
    %v214 = vld [vmem:[%s5 + $0x10] sm:$0xff]
    %v215 = vld [vmem:[%s5 + $0x18] sm:$0xff]
    %v216 = vld [vmem:[%s6] sm:$0x1]
    %v218 = vlaneseq
    %v219 = vshrl.u32 %v218, 7
    %v220 = vsub.s32 0, %v219
    %v221 = vrot.slane %v216, %v220
    %v224 = vsel %vm137, %v211, 0
    %226 = vmatprep.subr.mxu0 0.0
    %227 = vmatpush1.msra.mxu0 %v212
    %228 = vmatprep.subr.mxu0 0.0
    %229 = vmatpush1.msra.mxu0 %v213
    %230 = vmatprep.subr.mxu0 0.0
    %231 = vmatpush1.msra.mxu0 %v214
    %232 = vmatprep.subr.mxu0 0.0
    %233 = vmatpush1.msra.mxu0 %v215
    %234 = vmatprep.subr.mxu0 0.0
    %235 = vmatpush1.msra.mxu0 0.0
    %236 = vmatprep.subr.mxu0 0.0
    %237 = vmatpush1.msra.mxu0 0.0
    %238 = vmatprep.subr.mxu0 0.0
    %239 = vmatpush1.msra.mxu0 0.0
    %240 = vmatprep.subr.mxu0 0.0
    %241 = vmatpush1.msra.mxu0 0.0
    %242 = vmatprep.subr.mxu0 0.0
    %243 = vmatpush1.msra.mxu0 0.0
    %244 = vmatprep.subr.mxu0 0.0
    %245 = vmatpush1.msra.mxu0 0.0
    %246 = vmatprep.subr.mxu0 0.0
    %247 = vmatpush1.msra.mxu0 0.0
    %248 = vmatprep.subr.mxu0 0.0
    %249 = vmatpush1.msra.mxu0 0.0
    %250 = vmatprep.subr.mxu0 0.0
    %251 = vmatpush1.msra.mxu0 0.0
    %252 = vmatprep.subr.mxu0 0.0
    %253 = vmatpush1.msra.mxu0 0.0
    %254 = vmatprep.subr.mxu0 0.0
    %255 = vmatpush1.msra.mxu0 0.0
    %256 = vmatprep.subr.mxu0 0.0
    %257 = vmatpush1.msra.mxu0 0.0
    %258 = vmatprep.subr.mxu0 0.0
    %259 = vmatpush1.msra.mxu0 0.0
    %260 = vmatprep.subr.mxu0 0.0
    %261 = vmatpush1.msra.mxu0 0.0
    %262 = vmatprep.subr.mxu0 0.0
    %263 = vmatpush1.msra.mxu0 0.0
    %264 = vmatprep.subr.mxu0 0.0
    %265 = vmatpush1.msra.mxu0 0.0
    %266 = vmatprep.subr.mxu0 0.0
    %267 = vmatpush1.msra.mxu0 0.0
    %268 = vmatprep.subr.mxu0 0.0
    %269 = vmatpush1.msra.mxu0 0.0
    %270 = vmatprep.subr.mxu0 0.0
    %271 = vmatpush1.msra.mxu0 0.0
    %272 = vmatprep.subr.mxu0 0.0
    %273 = vmatpush1.msra.mxu0 0.0
    %274 = vmatprep.subr.mxu0 0.0
    %275 = vmatpush1.msra.mxu0 0.0
    %276 = vmatprep.subr.mxu0 0.0
    %277 = vmatpush1.msra.mxu0 0.0
    %278 = vmatprep.subr.mxu0 0.0
    %279 = vmatpush1.msra.mxu0 0.0
    %280 = vmatprep.subr.mxu0 0.0
    %281 = vmatpush1.msra.mxu0 0.0
    %282 = vmatprep.subr.mxu0 0.0
    %283 = vmatpush1.msra.mxu0 0.0
    %284 = vmatprep.subr.mxu0 0.0
    %285 = vmatpush1.msra.mxu0 0.0
    %286 = vmatprep.subr.mxu0 0.0
    %287 = vmatpush1.msra.mxu0 0.0
    %288 = vmatprep.subr.mxu0 0.0
    %289 = vmatpush1.msra.mxu0 0.0
    %290 = vmatprep.mubr.f32.mxu0 0.0
    %291 = vmatmul.mubr.f32.gmra.mrb[0].mxu0 %v224
    %v292 = vpop.f32.mrb[0].mxu0
    %v293 = vadd.f32 %v221, %v292
    %v294 = vpop.f32.mrb[0].mxu0
    %295 = vdwg.mxu0
    %v296 = vtanh.pop %v293
    %vm297 = vcmask 31744
    %298 = vst.msk [vmem:[#allocation5] sm:$0xff] %vm297, %v296
    // Predicated region
    $region34: #{tpu_custom_call.1} parent=1 // pred_check
      _
    $region35: #{tpu_custom_call.1} parent=1 // pred_check_branch
      %300 = sbr.rel (0) target = $region37
    $region36: #{tpu_custom_call.1} parent=1 // pred_region
      %s302 = ssub.s32 128, 32
      %303 = vsyncadd [#allocation4], %s302
      %s304 = sshll.u32 [#allocation5], 4
      %s305 = int_to_ptr.vmem [resolvable:$true] %s304
      %310 = dma.vmem_to_hbm [thread:$0]  %s305, 32, %s7, [#allocation4], 32, 32, 2
    $region37: #{tpu_custom_call.1} parent=1 // pred_fallthru
      _
    // Predicated region
    $region38: #{tpu_custom_call.1} parent=1 // pred_check
      _
    $region39: #{tpu_custom_call.1} parent=1 // pred_check_branch
      %312 = sbr.rel (0) target = $region41
    $region40: #{tpu_custom_call.1} parent=1 // pred_region
      %313 = dma.done [#allocation4], 128
    $region41: #{tpu_custom_call.1} parent=1 // pred_fallthru
      _
    %314 = vsyncpa [#allocation3], 1
    %315 = vsyncpa [#allocation4], 1

</llo_original>
